<compile_context>
chip_gen: v7x
topology: tpu7x:2x2x1
jax: 0.10.0
libtpu: 0.0.40
codegen_flags: <defaults>
</compile_context>

<pallas_src>
import jax
import jax.numpy as jnp
from jax.experimental import pallas as pl
from jax.experimental.pallas import tpu as pltpu

INPUT_DIM = 16
DICT_DIM = 128
W1, W2, W3 = 16, 32, 64          # layer1 / layer2 / layer3 widths
LANE = 128                       # lane width of the packed parameter slabs
MAX_TN = 4096                    # max rows per grid step

# ---- static layout of the packed weight slab (sublane offsets, all mult. of 16) ----
# order: w1a, w2a, wfb(=w1b||wsb), w2b_aug(=[w2b;I]), wfc(=w1c||wsc), w2c_aug(=[w2c;I]), wl
_W_DIMS = [
    (INPUT_DIM, W1),        # w1a      16 x 16
    (W1, W1),               # w2a      16 x 16
    (W1, 2 * W2),           # wfb      16 x 64
    (2 * W2, W2),           # w2b_aug  64 x 32
    (W2, 2 * W3),           # wfc      32 x 128
    (2 * W3, W3),           # w2c_aug 128 x 64
    (W3, DICT_DIM),         # wl       64 x 128
]
_W_OFFS = []
_off = 0
for _k, _n in _W_DIMS:
    _W_OFFS.append(_off)
    _off += _k
W_ROWS = _off                    # 336
(OFF_W1A, OFF_W2A, OFF_WFB, OFF_W2B, OFF_WFC, OFF_W2C, OFF_WL) = _W_OFFS

# bias slab rows: 0:b1a 1:b2a 2:bfb 3:b2b 4:bfc 5:b2c 6:bl (7: zero pad)
B_ROWS = 8


def resnet_kernel(x_ref, w_ref, b_ref, o_ref):
    f32 = jnp.float32
    h = x_ref[...].astype(f32)

    def w(off, k, n):
        # static, tile-aligned view of the bf16 weight slab
        return w_ref[pl.ds(off, k), pl.ds(0, n)]

    def b(row, n):
        # f32 bias row, shape (1, n)
        return b_ref[pl.ds(row, 1), pl.ds(0, n)]

    def mm(a_f32, w_bf16):
        # bf16 x bf16 MXU matmul, f32 accumulation
        return jnp.dot(a_f32.astype(jnp.bfloat16), w_bf16,
                       preferred_element_type=f32)

    # ---- block A: 16 -> 16, identity shortcut ----
    z = mm(h, w(OFF_W1A, INPUT_DIM, W1)) + b(0, W1)
    z = jnp.maximum(z, 0.0)
    z = mm(z, w(OFF_W2A, W1, W1)) + b(1, W1)
    h = jnp.maximum(z + h, 0.0)

    # ---- block B: 16 -> 32, fused fc1||shortcut, residual folded into fc2 ----
    zc = mm(h, w(OFF_WFB, W1, 2 * W2)) + b(2, 2 * W2)          # [tn, 64]
    lane = jax.lax.broadcasted_iota(jnp.int32, zc.shape, 1)
    zc = jnp.where(lane < W2, jnp.maximum(zc, 0.0), zc)        # relu only on fc1 half
    z = mm(zc, w(OFF_W2B, 2 * W2, W2)) + b(3, W2)              # fc2 + shortcut (identity block)
    h = jnp.maximum(z, 0.0)

    # ---- block C: 32 -> 64, fused fc1||shortcut, residual folded into fc2 ----
    zc = mm(h, w(OFF_WFC, W2, 2 * W3)) + b(4, 2 * W3)          # [tn, 128]
    lane = jax.lax.broadcasted_iota(jnp.int32, zc.shape, 1)
    zc = jnp.where(lane < W3, jnp.maximum(zc, 0.0), zc)
    z = mm(zc, w(OFF_W2C, 2 * W3, W3)) + b(5, W3)
    h = jnp.maximum(z, 0.0)

    # ---- final linear: 64 -> 128 ----
    out = mm(h, w(OFF_WL, W3, DICT_DIM)) + b(6, DICT_DIM)
    o_ref[...] = out.astype(o_ref.dtype)


def _row_tile(n):
    """Row tile: big slabs, but keep grid >= 2 so both v7x TensorCores engage."""
    if n <= 8:
        return n                                   # single tiny step
    if n <= MAX_TN:
        half = (n + 1) // 2
        return ((half + 7) // 8) * 8               # 8-row aligned half -> grid of 2
    return MAX_TN


def prepare_params(params):
    """One-time host-side packing (hoisted out of the forward path).

    Returns (w_slab [336,128] bf16, b_slab [8,128] f32):
      * fc1 and projection-shortcut weights of blocks B/C horizontally fused,
      * "+ shortcut" folded into the second matmul via an identity-augmented weight,
      * everything sublane-stacked into one lane-padded slab per kind.
    """
    (w1a, b1a, w2a, b2a,
     w1b, b1b, w2b, b2b, wsb, bsb,
     w1c, b1c, w2c, b2c, wsc, bsc,
     wl, bl) = params

    wfb = jnp.concatenate([w1b, wsb], axis=1)                           # [16, 64]
    bfb = jnp.concatenate([b1b, bsb], axis=1)                           # [1, 64]
    wfc = jnp.concatenate([w1c, wsc], axis=1)                           # [32, 128]
    bfc = jnp.concatenate([b1c, bsc], axis=1)                           # [1, 128]
    w2b_aug = jnp.concatenate([w2b, jnp.eye(W2, dtype=jnp.float32)], 0)  # [64, 32]
    w2c_aug = jnp.concatenate([w2c, jnp.eye(W3, dtype=jnp.float32)], 0)  # [128, 64]

    weights = [w1a, w2a, wfb, w2b_aug, wfc, w2c_aug, wl]
    assert [tuple(w.shape) for w in weights] == [tuple(d) for d in _W_DIMS]
    w_slab = jnp.concatenate(
        [jnp.pad(w, ((0, 0), (0, LANE - w.shape[1]))) for w in weights], axis=0
    ).astype(jnp.bfloat16)                                              # [336, 128]

    biases = [b1a, b2a, bfb, b2b, bfc, b2c, bl]
    b_rows = [jnp.pad(bb, ((0, 0), (0, LANE - bb.shape[1]))) for bb in biases]
    b_rows.append(jnp.zeros((1, LANE), jnp.float32))
    b_slab = jnp.concatenate(b_rows, axis=0)                            # [8, 128]

    return jax.block_until_ready(w_slab), jax.block_until_ready(b_slab)


def resnet_forward(x, fused_params, out_dtype=jnp.float32):
    """x: [N, INPUT_DIM] float32.  fused_params: output of prepare_params()."""
    w_slab, b_slab = fused_params
    N, D = x.shape
    assert D == INPUT_DIM

    tn = _row_tile(N)
    grid = (pl.cdiv(N, tn),)      # ragged N handled by padded edge block

    return pl.pallas_call(
        resnet_kernel,
        out_shape=jax.ShapeDtypeStruct((N, DICT_DIM), out_dtype),
        grid_spec=pltpu.PrefetchScalarGridSpec(
            num_scalar_prefetch=0,
            grid=grid,
            in_specs=[
                pl.BlockSpec((tn, INPUT_DIM), lambda i: (i, 0)),
                pl.BlockSpec((W_ROWS, LANE), lambda i: (0, 0)),   # whole weight slab, resident
                pl.BlockSpec((B_ROWS, LANE), lambda i: (0, 0)),   # whole bias slab, resident
            ],
            out_specs=pl.BlockSpec((tn, DICT_DIM), lambda i: (i, 0)),
        ),
        compiler_params=pltpu.CompilerParams(
            dimension_semantics=("parallel",),
            # headroom for TN=4096 double-buffered blocks; stays < v7x's 64 MiB physical
            vmem_limit_bytes=48 * 1024 * 1024,
        ),
    )(x, w_slab, b_slab)


def init_params(key):
    """Deterministic synthetic parameters (PyTorch Linear shapes, stored transposed)."""
    def linear(key, fan_in, fan_out):
        k1, k2 = jax.random.split(key)
        bound = 1.0 / jnp.sqrt(fan_in)
        w = jax.random.uniform(k1, (fan_in, fan_out), jnp.float32, -bound, bound)
        b = jax.random.uniform(k2, (1, fan_out), jnp.float32, -bound, bound)
        return w, b

    keys = iter(jax.random.split(key, 16))
    # block A: 16 -> 16 (identity shortcut -> no projection params)
    w1a, b1a = linear(next(keys), INPUT_DIM, W1)
    w2a, b2a = linear(next(keys), W1, W1)
    # block B: 16 -> 32 (projection shortcut)
    w1b, b1b = linear(next(keys), W1, W2)
    w2b, b2b = linear(next(keys), W2, W2)
    wsb, bsb = linear(next(keys), W1, W2)
    # block C: 32 -> 64 (projection shortcut)
    w1c, b1c = linear(next(keys), W2, W3)
    w2c, b2c = linear(next(keys), W3, W3)
    wsc, bsc = linear(next(keys), W2, W3)
    # final linear: 64 -> 128
    wl, bl = linear(next(keys), W3, DICT_DIM)
    return (w1a, b1a, w2a, b2a,
            w1b, b1b, w2b, b2b, wsb, bsb,
            w1c, b1c, w2c, b2c, wsc, bsc,
            wl, bl)


def resnet_reference(x, params):
    """Pure-JAX f32 reference of the same forward pass (unfused)."""
    (w1a, b1a, w2a, b2a,
     w1b, b1b, w2b, b2b, wsb, bsb,
     w1c, b1c, w2c, b2c, wsc, bsc,
     wl, bl) = params

    def block(h, w1, b1, w2, b2, sc):
        z = jnp.maximum(h @ w1 + b1, 0.0)
        z = z @ w2 + b2
        return jnp.maximum(z + sc, 0.0)

    h = x
    h = block(h, w1a, b1a, w2a, b2a, h)                      # identity shortcut
    h = block(h, w1b, b1b, w2b, b2b, h @ wsb + bsb)          # projection
    h = block(h, w1c, b1c, w2c, b2c, h @ wsc + bsc)          # projection
    return h @ wl + bl


if __name__ == "__main__":
    key = jax.random.PRNGKey(0)
    k_x, k_p = jax.random.split(key)

    N = 16
    x = jax.random.normal(k_x, (N, INPUT_DIM), jnp.float32)
    params = init_params(k_p)
    fused_params = prepare_params(params)     # hoisted: packed/cast once, reused per call

    out = resnet_forward(x, fused_params)
    out = jax.block_until_ready(out)

    ref = resnet_reference(x, params)
    assert out.shape == (N, DICT_DIM)
    # tolerance loosened because matmul operands run in bf16 (f32 accumulation)
    assert jnp.allclose(out, ref, atol=5e-2, rtol=5e-2), float(jnp.max(jnp.abs(out - ref)))

    print("KERNEL_OK")
</pallas_src>

<mosaic_0001>
module attributes {stable_mosaic.version = 11 : i64} {
  func.func @resnet_kernel(%arg0: i32, %arg1: memref<8x16xf32, #tpu.memory_space<vmem>>, %arg2: memref<336x128xbf16, #tpu.memory_space<vmem>>, %arg3: memref<8x128xf32, #tpu.memory_space<vmem>>, %arg4: memref<8x128xf32, #tpu.memory_space<vmem>>) attributes {dimension_semantics = [#tpu.dimension_semantics<parallel>], iteration_bounds = array<i64: 2>, scalar_prefetch = 0 : i64, scratch_operands = 0 : i64, tpu.core_type = #tpu.core_type<tc>, window_params = [{transform_indices = @transform_0, window_bounds = array<i64: 8, 16>}, {pipeline_mode = #tpu.pipeline_mode<synchronous>, transform_indices = @transform_1, window_bounds = array<i64: 336, 128>}, {pipeline_mode = #tpu.pipeline_mode<synchronous>, transform_indices = @transform_2, window_bounds = array<i64: 8, 128>}, {transform_indices = @transform_3, window_bounds = array<i64: 8, 128>}]} {
    %c0 = arith.constant 0 : index
    %c0_0 = arith.constant 0 : index
    %0 = vector.load %arg1[%c0, %c0_0] : memref<8x16xf32, #tpu.memory_space<vmem>>, vector<8x16xf32>
    %c0_1 = arith.constant 0 : index
    %c0_2 = arith.constant 0 : index
    %1 = vector.load %arg2[%c0_1, %c0_2] : memref<336x128xbf16, #tpu.memory_space<vmem>>, vector<16x16xbf16>
    %2 = arith.truncf %0 : vector<8x16xf32> to vector<8x16xbf16>
    %cst = arith.constant dense<0.000000e+00> : vector<8x16xf32>
    %3 = tpu.matmul %2, %1, %cst {dimension_numbers = #tpu.dot_dimension_numbers<[1], [0], [0], [1], [0, 0, 1, 1], [], []>} : vector<8x16xbf16>, vector<16x16xbf16>, vector<8x16xf32> -> vector<8x16xf32>
    %c0_3 = arith.constant 0 : index
    %c0_4 = arith.constant 0 : index
    %4 = vector.load %arg3[%c0_3, %c0_4] : memref<8x128xf32, #tpu.memory_space<vmem>>, vector<1x16xf32>
    %5 = vector.broadcast %4 : vector<1x16xf32> to vector<8x16xf32>
    %6 = arith.addf %3, %5 : vector<8x16xf32>
    %cst_5 = arith.constant 0.000000e+00 : f32
    %7 = vector.broadcast %cst_5 : f32 to vector<8x16xf32>
    %8 = arith.maximumf %6, %7 : vector<8x16xf32>
    %c16 = arith.constant 16 : index
    %c0_6 = arith.constant 0 : index
    %9 = vector.load %arg2[%c16, %c0_6] : memref<336x128xbf16, #tpu.memory_space<vmem>>, vector<16x16xbf16>
    %10 = arith.truncf %8 : vector<8x16xf32> to vector<8x16xbf16>
    %cst_7 = arith.constant dense<0.000000e+00> : vector<8x16xf32>
    %11 = tpu.matmul %10, %9, %cst_7 {dimension_numbers = #tpu.dot_dimension_numbers<[1], [0], [0], [1], [0, 0, 1, 1], [], []>} : vector<8x16xbf16>, vector<16x16xbf16>, vector<8x16xf32> -> vector<8x16xf32>
    %c1 = arith.constant 1 : index
    %c0_8 = arith.constant 0 : index
    %12 = vector.load %arg3[%c1, %c0_8] : memref<8x128xf32, #tpu.memory_space<vmem>>, vector<1x16xf32>
    %13 = vector.broadcast %12 : vector<1x16xf32> to vector<8x16xf32>
    %14 = arith.addf %11, %13 : vector<8x16xf32>
    %15 = arith.addf %14, %0 : vector<8x16xf32>
    %cst_9 = arith.constant 0.000000e+00 : f32
    %16 = vector.broadcast %cst_9 : f32 to vector<8x16xf32>
    %17 = arith.maximumf %15, %16 : vector<8x16xf32>
    %c32 = arith.constant 32 : index
    %c0_10 = arith.constant 0 : index
    %18 = vector.load %arg2[%c32, %c0_10] : memref<336x128xbf16, #tpu.memory_space<vmem>>, vector<16x64xbf16>
    %19 = arith.truncf %17 : vector<8x16xf32> to vector<8x16xbf16>
    %cst_11 = arith.constant dense<0.000000e+00> : vector<8x64xf32>
    %20 = tpu.matmul %19, %18, %cst_11 {dimension_numbers = #tpu.dot_dimension_numbers<[1], [0], [0], [1], [0, 0, 1, 1], [], []>} : vector<8x16xbf16>, vector<16x64xbf16>, vector<8x64xf32> -> vector<8x64xf32>
    %c2 = arith.constant 2 : index
    %c0_12 = arith.constant 0 : index
    %21 = vector.load %arg3[%c2, %c0_12] : memref<8x128xf32, #tpu.memory_space<vmem>>, vector<1x64xf32>
    %22 = vector.broadcast %21 : vector<1x64xf32> to vector<8x64xf32>
    %23 = arith.addf %20, %22 : vector<8x64xf32>
    %24 = tpu.iota {dimensions = array<i32: 1>} : vector<8x64xi32>
    %c32_i32 = arith.constant 32 : i32
    %25 = vector.broadcast %c32_i32 : i32 to vector<8x64xi32>
    %26 = arith.cmpi slt, %24, %25 : vector<8x64xi32>
    %cst_13 = arith.constant 0.000000e+00 : f32
    %27 = vector.broadcast %cst_13 : f32 to vector<8x64xf32>
    %28 = arith.maximumf %23, %27 : vector<8x64xf32>
    %29 = arith.select %26, %28, %23 : vector<8x64xi1>, vector<8x64xf32>
    %c48 = arith.constant 48 : index
    %c0_14 = arith.constant 0 : index
    %30 = vector.load %arg2[%c48, %c0_14] : memref<336x128xbf16, #tpu.memory_space<vmem>>, vector<64x32xbf16>
    %31 = arith.truncf %29 : vector<8x64xf32> to vector<8x64xbf16>
    %cst_15 = arith.constant dense<0.000000e+00> : vector<8x32xf32>
    %32 = tpu.matmul %31, %30, %cst_15 {dimension_numbers = #tpu.dot_dimension_numbers<[1], [0], [0], [1], [0, 0, 1, 1], [], []>} : vector<8x64xbf16>, vector<64x32xbf16>, vector<8x32xf32> -> vector<8x32xf32>
    %c3 = arith.constant 3 : index
    %c0_16 = arith.constant 0 : index
    %33 = vector.load %arg3[%c3, %c0_16] : memref<8x128xf32, #tpu.memory_space<vmem>>, vector<1x32xf32>
    %34 = vector.broadcast %33 : vector<1x32xf32> to vector<8x32xf32>
    %35 = arith.addf %32, %34 : vector<8x32xf32>
    %cst_17 = arith.constant 0.000000e+00 : f32
    %36 = vector.broadcast %cst_17 : f32 to vector<8x32xf32>
    %37 = arith.maximumf %35, %36 : vector<8x32xf32>
    %c112 = arith.constant 112 : index
    %c0_18 = arith.constant 0 : index
    %38 = vector.load %arg2[%c112, %c0_18] : memref<336x128xbf16, #tpu.memory_space<vmem>>, vector<32x128xbf16>
    %39 = arith.truncf %37 : vector<8x32xf32> to vector<8x32xbf16>
    %cst_19 = arith.constant dense<0.000000e+00> : vector<8x128xf32>
    %40 = tpu.matmul %39, %38, %cst_19 {dimension_numbers = #tpu.dot_dimension_numbers<[1], [0], [0], [1], [0, 0, 1, 1], [], []>} : vector<8x32xbf16>, vector<32x128xbf16>, vector<8x128xf32> -> vector<8x128xf32>
    %c4 = arith.constant 4 : index
    %c0_20 = arith.constant 0 : index
    %41 = vector.load %arg3[%c4, %c0_20] : memref<8x128xf32, #tpu.memory_space<vmem>>, vector<1x128xf32>
    %42 = vector.broadcast %41 : vector<1x128xf32> to vector<8x128xf32>
    %43 = arith.addf %40, %42 : vector<8x128xf32>
    %44 = tpu.iota {dimensions = array<i32: 1>} : vector<8x128xi32>
    %c64_i32 = arith.constant 64 : i32
    %45 = vector.broadcast %c64_i32 : i32 to vector<8x128xi32>
    %46 = arith.cmpi slt, %44, %45 : vector<8x128xi32>
    %cst_21 = arith.constant 0.000000e+00 : f32
    %47 = vector.broadcast %cst_21 : f32 to vector<8x128xf32>
    %48 = arith.maximumf %43, %47 : vector<8x128xf32>
    %49 = arith.select %46, %48, %43 : vector<8x128xi1>, vector<8x128xf32>
    %c144 = arith.constant 144 : index
    %c0_22 = arith.constant 0 : index
    %50 = vector.load %arg2[%c144, %c0_22] : memref<336x128xbf16, #tpu.memory_space<vmem>>, vector<128x64xbf16>
    %51 = arith.truncf %49 : vector<8x128xf32> to vector<8x128xbf16>
    %cst_23 = arith.constant dense<0.000000e+00> : vector<8x64xf32>
    %52 = tpu.matmul %51, %50, %cst_23 {dimension_numbers = #tpu.dot_dimension_numbers<[1], [0], [0], [1], [0, 0, 1, 1], [], []>} : vector<8x128xbf16>, vector<128x64xbf16>, vector<8x64xf32> -> vector<8x64xf32>
    %c5 = arith.constant 5 : index
    %c0_24 = arith.constant 0 : index
    %53 = vector.load %arg3[%c5, %c0_24] : memref<8x128xf32, #tpu.memory_space<vmem>>, vector<1x64xf32>
    %54 = vector.broadcast %53 : vector<1x64xf32> to vector<8x64xf32>
    %55 = arith.addf %52, %54 : vector<8x64xf32>
    %cst_25 = arith.constant 0.000000e+00 : f32
    %56 = vector.broadcast %cst_25 : f32 to vector<8x64xf32>
    %57 = arith.maximumf %55, %56 : vector<8x64xf32>
    %c272 = arith.constant 272 : index
    %c0_26 = arith.constant 0 : index
    %58 = vector.load %arg2[%c272, %c0_26] : memref<336x128xbf16, #tpu.memory_space<vmem>>, vector<64x128xbf16>
    %59 = arith.truncf %57 : vector<8x64xf32> to vector<8x64xbf16>
    %cst_27 = arith.constant dense<0.000000e+00> : vector<8x128xf32>
    %60 = tpu.matmul %59, %58, %cst_27 {dimension_numbers = #tpu.dot_dimension_numbers<[1], [0], [0], [1], [0, 0, 1, 1], [], []>} : vector<8x64xbf16>, vector<64x128xbf16>, vector<8x128xf32> -> vector<8x128xf32>
    %c6 = arith.constant 6 : index
    %c0_28 = arith.constant 0 : index
    %61 = vector.load %arg3[%c6, %c0_28] : memref<8x128xf32, #tpu.memory_space<vmem>>, vector<1x128xf32>
    %62 = vector.broadcast %61 : vector<1x128xf32> to vector<8x128xf32>
    %63 = arith.addf %60, %62 : vector<8x128xf32>
    %c0_29 = arith.constant 0 : index
    %c0_30 = arith.constant 0 : index
    %64 = vector.load %arg4[%c0_29, %c0_30] : memref<8x128xf32, #tpu.memory_space<vmem>>, vector<8x128xf32>
    tpu.vector_store %arg4[%c0_29, %c0_30], %63 {strides = array<i32>} : memref<8x128xf32, #tpu.memory_space<vmem>>, vector<8x128xf32>,
    return
  }
  func.func @transform_0(%arg0: i32) -> (i32, i32) {
    %c0_i32 = arith.constant 0 : i32
    %c0_i32_0 = arith.constant 0 : i32
    return %arg0, %c0_i32 : i32, i32
  }
  func.func @transform_1(%arg0: i32) -> (i32, i32) {
    %c0_i32 = arith.constant 0 : i32
    %c0_i32_0 = arith.constant 0 : i32
    %c0_i32_1 = arith.constant 0 : i32
    return %c0_i32, %c0_i32_0 : i32, i32
  }
  func.func @transform_2(%arg0: i32) -> (i32, i32) {
    %c0_i32 = arith.constant 0 : i32
    %c0_i32_0 = arith.constant 0 : i32
    %c0_i32_1 = arith.constant 0 : i32
    return %c0_i32, %c0_i32_0 : i32, i32
  }
  func.func @transform_3(%arg0: i32) -> (i32, i32) {
    %c0_i32 = arith.constant 0 : i32
    %c0_i32_0 = arith.constant 0 : i32
    return %arg0, %c0_i32 : i32, i32
  }
}

</mosaic_0001>

<llo_original>
// kernel: tpu_custom_call.1
$region0: #{tpu_custom_call.1}
  #allocation0 [shape = 'u32[]', space=smem, size = 0x4, offset = 0x4, fixed_abs, tag = 'smem constant byte address 0x4 - core index']
  #allocation1 [shape = 'u32[144,128]{1,0:T(1,128)}', space=vmem, size = 0x12000, scoped, tag = 'internal scratch']
  %s0 = inlined_call_operand.hbm [shape: f32[16,16], index: 0, kind: input, shape index: {}]
  %s1 = inlined_call_operand.hbm [shape: bf16[336,128], index: 1, kind: input, shape index: {}]
  %s2 = inlined_call_operand.hbm [shape: f32[8,128], index: 2, kind: input, shape index: {}]
  %s3 = inlined_call_operand.hbm [shape: f32[16,128], index: 3, kind: output, shape index: {}]
  %s4 = sld [smem:[#allocation0]]
  $region57: #{tpu_custom_call.1} parent=0
    _
  %s6 = ssub.s32 1, %s4
  %s7 = scalar_select 0, %s6, %s4
  $region1: #{tpu_custom_call.1} parent=0
    #allocation2 [shape = 'u8[8192]{0}', space=vmem, size = 0x2000, scoped, tag = 'input window, operand 0']
    #allocation3 [shape = 's32[2]{0}', space=sflag, size = 0x8, scoped, tag = 'scoped memory for tpu_custom_call.1']
    #allocation4 [shape = 's32[2]{0}', space=sflag, size = 0x8, scoped, tag = 'scoped memory for tpu_custom_call.1']
    #allocation5 [shape = 'u8[86016]{0}', space=vmem, size = 0x15000, scoped, tag = 'input window, operand 1, single buffered']
    #allocation6 [shape = 's32[1]{0}', space=sflag, size = 0x4, scoped, tag = 'scoped memory for tpu_custom_call.1']
    #allocation7 [shape = 'u8[4096]{0}', space=vmem, size = 0x1000, scoped, tag = 'input window, operand 2, single buffered']
    #allocation8 [shape = 'u8[8192]{0}', space=vmem, size = 0x2000, scoped, tag = 'output window, operand 0']
    %8 = vsyncpa [#allocation3], 0
    %s9 = scalar_lea.sflag [#allocation3], 1
    %10 = vsyncpa %s9, 0
    %11 = vsyncpa [#allocation6], 0
    %12 = vsyncpa [#allocation4], 0
    %s13 = scalar_lea.sflag [#allocation4], 1
    %14 = vsyncpa %s13, 0
    loop: start=0, step=1, limit=4
    $region2: #{tpu_custom_call.1} parent=1 // loop_pre_header
      _
    $region3: #{tpu_custom_call.1} parent=1 // loop_header
      %s16 = sphi 0, %s20
      %p17 = scmp.ge.s32.totalorder %s16, 4
      %s26 = sphi 0, %s28
      %s29 = sphi 0, %s26
      %s30 = sphi 0, %s29
      %s46 = sphi 0, %s30
      %s50 = sphi 0, %s50
      %s52 = sphi 0, %s50
      %s53 = sphi 0, %s52
      %s67 = sphi 0, %s53
      %s71 = sphi 0, %s71
      %s73 = sphi 0, %s71
      %s74 = sphi 0, %s73
      %s88 = sphi 0, %s74
      %s94 = sphi 0, %s96
      %s97 = sphi 0, %s94
      %s98 = sphi 0, %s97
      %s114 = sphi 0, %s98
    $region4: #{tpu_custom_call.1} parent=1 // loop_header_branch
      %19 = sbr.rel (%p17) target = $region8
    $region5: #{tpu_custom_call.1} parent=1 // loop_body
      %s21 = ssub.s32 %s16, 1
      %s22 = ssub.s32 %s16, 2
      %s23 = sadd.s32 %s16, 1
      %s24 = ssub.s32 %s16, %s23
      %p25 = scmp.eq.s32.totalorder %s24, 0
      %s27 = sadd.s32 %s26, 1
      %s28 = scalar_select %p25, %s26, %s27
      %p31 = pneg %p25
      %p32 = scmp.eq.s32.totalorder %s16, 1
      %p33 = por %p31, %p32
      %p34 = scmp.ne.s32.totalorder %s26, %s29
      %p35 = scmp.eq.s32.totalorder %s16, 0
      %p36 = por %p34, %p35
      %p37 = scmp.ne.s32.totalorder %s26, %s29
      %p38 = scmp.eq.s32.totalorder %s21, 1
      %p39 = por %p37, %p38
      %p40 = scmp.ne.s32.totalorder %s29, %s30
      %p41 = scmp.eq.s32.totalorder %s21, 0
      %p42 = por %p40, %p41
      %p43 = scmp.ne.s32.totalorder %s29, %s30
      %p44 = scmp.eq.s32.totalorder %s22, 1
      %p45 = por %p43, %p44
      %p47 = scmp.ne.s32.totalorder %s30, %s46
      %p48 = scmp.eq.s32.totalorder %s22, 0
      %p49 = por %p47, %p48
      %s51 = sadd.s32 %s50, 1
      %p54 = scmp.eq.s32.totalorder %s16, 1
      %p55 = scmp.ne.s32.totalorder %s50, %s52
      %p56 = scmp.eq.s32.totalorder %s16, 0
      %p57 = por %p55, %p56
      %p58 = scmp.ne.s32.totalorder %s50, %s52
      %p59 = scmp.eq.s32.totalorder %s21, 1
      %p60 = por %p58, %p59
      %p61 = scmp.ne.s32.totalorder %s52, %s53
      %p62 = scmp.eq.s32.totalorder %s21, 0
      %p63 = por %p61, %p62
      %p64 = scmp.ne.s32.totalorder %s52, %s53
      %p65 = scmp.eq.s32.totalorder %s22, 1
      %p66 = por %p64, %p65
      %p68 = scmp.ne.s32.totalorder %s53, %s67
      %p69 = scmp.eq.s32.totalorder %s22, 0
      %p70 = por %p68, %p69
      %s72 = sadd.s32 %s71, 1
      %p75 = scmp.eq.s32.totalorder %s16, 1
      %p76 = scmp.ne.s32.totalorder %s71, %s73
      %p77 = scmp.eq.s32.totalorder %s16, 0
      %p78 = por %p76, %p77
      %p79 = scmp.ne.s32.totalorder %s71, %s73
      %p80 = scmp.eq.s32.totalorder %s21, 1
      %p81 = por %p79, %p80
      %p82 = scmp.ne.s32.totalorder %s73, %s74
      %p83 = scmp.eq.s32.totalorder %s21, 0
      %p84 = por %p82, %p83
      %p85 = scmp.ne.s32.totalorder %s73, %s74
      %p86 = scmp.eq.s32.totalorder %s22, 1
      %p87 = por %p85, %p86
      %p89 = scmp.ne.s32.totalorder %s74, %s88
      %p90 = scmp.eq.s32.totalorder %s22, 0
      %p91 = por %p89, %p90
      %s92 = ssub.s32 %s16, %s23
      %p93 = scmp.eq.s32.totalorder %s92, 0
      %s95 = sadd.s32 %s94, 1
      %s96 = scalar_select %p93, %s94, %s95
      %p99 = pneg %p93
      %p100 = scmp.eq.s32.totalorder %s16, 1
      %p101 = por %p99, %p100
      %p102 = scmp.ne.s32.totalorder %s94, %s97
      %p103 = scmp.eq.s32.totalorder %s16, 0
      %p104 = por %p102, %p103
      %p105 = scmp.ne.s32.totalorder %s94, %s97
      %p106 = scmp.eq.s32.totalorder %s21, 1
      %p107 = por %p105, %p106
      %p108 = scmp.ne.s32.totalorder %s97, %s98
      %p109 = scmp.eq.s32.totalorder %s21, 0
      %p110 = por %p108, %p109
      %p111 = scmp.ne.s32.totalorder %s97, %s98
      %p112 = scmp.eq.s32.totalorder %s22, 1
      %p113 = por %p111, %p112
      %p115 = scmp.ne.s32.totalorder %s98, %s114
      %p116 = scmp.eq.s32.totalorder %s22, 0
      %p117 = por %p115, %p116
      %p118 = scmp.le.s32.totalorder 1, %s16
      %p119 = scmp.lt.s32.totalorder %s16, 3
      %p120 = pnand %p118, %p119
      %p121 = pneg %p120
      // Predicated region
      $region9: #{tpu_custom_call.1} parent=5 // pred_check
        _
      $region10: #{tpu_custom_call.1} parent=5 // pred_check_branch
        %123 = sbr.rel (%p120) target = $region12
      $region11: #{tpu_custom_call.1} parent=5 // pred_region
        %s124 = ssub.s32 %s16, 1
        // Predicated region
        $region13: #{tpu_custom_call.1} parent=11 // pred_check
          %p125 = pneg %p63
        $region14: #{tpu_custom_call.1} parent=11 // pred_check_branch
          %127 = sbr.rel (%p125) target = $region16
        $region15: #{tpu_custom_call.1} parent=11 // pred_region
          %s129 = ssub.s32 2688, 2688
          %130 = vsyncadd [#allocation6], %s129
          %s131 = sshll.u32 [#allocation5], 4
          %s132 = int_to_ptr.vmem [resolvable:$true] %s131
          %137 = dma.hbm_to_vmem [thread:$0]  %s1, 2688, %s132, [#allocation6], 64, 64, 4
        $region16: #{tpu_custom_call.1} parent=11 // pred_fallthru
          _
        // Predicated region
        $region17: #{tpu_custom_call.1} parent=11 // pred_check
          %p138 = pneg %p84
        $region18: #{tpu_custom_call.1} parent=11 // pred_check_branch
          %140 = sbr.rel (%p138) target = $region20
        $region19: #{tpu_custom_call.1} parent=11 // pred_region
          %s142 = ssub.s32 128, 128
          %143 = vsyncadd [#allocation6], %s142
          %s145 = sshll.u32 [#allocation7], 4
          %s146 = int_to_ptr.vmem [resolvable:$true] %s145
          %148 = dma.hbm_to_vmem [thread:$0]  %s2, 128, %s146, [#allocation6]
        $region20: #{tpu_custom_call.1} parent=11 // pred_fallthru
          _
      $region12: #{tpu_custom_call.1} parent=5 // pred_fallthru
        _
      %p149 = scmp.lt.s32.totalorder %s16, 2
      // Predicated region
      $region21: #{tpu_custom_call.1} parent=5 // pred_check
        %p150 = pneg %p149
      $region22: #{tpu_custom_call.1} parent=5 // pred_check_branch
        %152 = sbr.rel (%p150) target = $region24
      $region23: #{tpu_custom_call.1} parent=5 // pred_region
        // Predicated region
        $region25: #{tpu_custom_call.1} parent=23 // pred_check
          %p153 = pneg %p36
        $region26: #{tpu_custom_call.1} parent=23 // pred_check_branch
          %155 = sbr.rel (%p153) target = $region28
        $region27: #{tpu_custom_call.1} parent=23 // pred_region
          %s156 = sand.u32 %s26, 1
          %s157 = scalar_lea.sflag [#allocation3], %s156
          %s158 = sand.u32 %s26, 1
          %s159 = smul.addr %s158, 8
          %s160 = scalar_lea.vmem [#allocation2], %s159
          %s162 = ssub.s32 128, 128
          %163 = vsyncadd %s157, %s162
          %s164 = smul.addr %s16, 128
          %s165 = scalar_lea.hbm %s0, %s164
          %s167 = sshll.u32 %s160, 4
          %s168 = int_to_ptr.vmem [resolvable:$true] %s167
          %170 = dma.hbm_to_vmem [thread:$0]  %s165, 128, %s168, %s157
        $region28: #{tpu_custom_call.1} parent=23 // pred_fallthru
          _
      $region24: #{tpu_custom_call.1} parent=5 // pred_fallthru
        _
      %p171 = scmp.le.s32.totalorder 1, %s16
      %p172 = scmp.lt.s32.totalorder %s16, 3
      %p173 = pnand %p171, %p172
      %p174 = pneg %p173
      // Predicated region
      $region29: #{tpu_custom_call.1} parent=5 // pred_check
        _
      $region30: #{tpu_custom_call.1} parent=5 // pred_check_branch
        %176 = sbr.rel (%p173) target = $region32
      $region31: #{tpu_custom_call.1} parent=5 // pred_region
        %s177 = ssub.s32 %s16, 1
        %s178 = sand.u32 %s29, 1
        %s179 = scalar_lea.sflag [#allocation3], %s178
        %s180 = sand.u32 %s29, 1
        %s181 = smul.addr %s180, 8
        %s182 = scalar_lea.vmem [#allocation2], %s181
        // Predicated region
        $region33: #{tpu_custom_call.1} parent=31 // pred_check
          %p183 = pneg %p42
        $region34: #{tpu_custom_call.1} parent=31 // pred_check_branch
          %185 = sbr.rel (%p183) target = $region36
        $region35: #{tpu_custom_call.1} parent=31 // pred_region
          %186 = dma.done %s179, 128
        $region36: #{tpu_custom_call.1} parent=31 // pred_fallthru
          _
        // Predicated region
        $region37: #{tpu_custom_call.1} parent=31 // pred_check
          %p187 = pneg %p63
        $region38: #{tpu_custom_call.1} parent=31 // pred_check_branch
          %189 = sbr.rel (%p187) target = $region40
        $region39: #{tpu_custom_call.1} parent=31 // pred_region
          %190 = dma.done [#allocation6], 2688
        $region40: #{tpu_custom_call.1} parent=31 // pred_fallthru
          _
        // Predicated region
        $region41: #{tpu_custom_call.1} parent=31 // pred_check
          %p191 = pneg %p84
        $region42: #{tpu_custom_call.1} parent=31 // pred_check_branch
          %193 = sbr.rel (%p191) target = $region44
        $region43: #{tpu_custom_call.1} parent=31 // pred_region
          %194 = dma.done [#allocation6], 128
        $region44: #{tpu_custom_call.1} parent=31 // pred_fallthru
          _
        %s195 = sand.u32 %s29, 1
        %s196 = scalar_lea.sflag [#allocation3], %s195
        %s197 = sand.u32 %s29, 1
        %s198 = smul.addr %s197, 8
        %s199 = scalar_lea.vmem [#allocation2], %s198
        %p200 = pneg %p42
        %p201 = pneg %p39
        %p202 = pneg %p63
        %p203 = pneg %p60
        %p204 = pneg %p84
        %p205 = pneg %p81
        %p206 = pneg %p110
        %p207 = pneg %p107
        %s208 = sand.u32 %s97, 1
        %s209 = scalar_lea.sflag [#allocation4], %s208
        %s210 = sand.u32 %s97, 1
        %s211 = smul.addr %s210, 8
        %s212 = scalar_lea.vmem [#allocation8], %s211
        %v214 = vld [vmem:[%s182] sm:$0xff]
        %v215 = vld [vmem:[#allocation5] sm:$0xf]
        %v216 = vld [vmem:[#allocation5 + $0x4] sm:$0xf]
        %v217 = vpack.c.bf16 %v214, %v214
        %v218 = vld [vmem:[#allocation7] sm:$0x1]
        %v219 = vlaneseq
        %v220 = vshrl.u32 %v219, 7
        %v221 = vsub.s32 0, %v220
        %v222 = vrot.slane %v218, %v221
        %v225 = vunpack.c.l.b16 %v215
        %v226 = vunpack.c.l.b16 %v216
        %v227 = vpack.c.b16 %v226, %v225
        %vm229 = vcmask 130048
        %v231 = vsel %vm229, %v217, 0
        %233 = vmatprep.subr.bf16.mxu0 0
        %234 = vmatpush1.bf16.msra.mxu0 %v227
        %235 = vmatprep.subr.bf16.mxu0 0
        %236 = vmatpush1.bf16.msra.mxu0 0
        %237 = vmatprep.subr.bf16.mxu0 0
        %238 = vmatpush1.bf16.msra.mxu0 0
        %239 = vmatprep.subr.bf16.mxu0 0
        %240 = vmatpush1.bf16.msra.mxu0 0
        %241 = vmatprep.subr.bf16.mxu0 0
        %242 = vmatpush1.bf16.msra.mxu0 0
        %243 = vmatprep.subr.bf16.mxu0 0
        %244 = vmatpush1.bf16.msra.mxu0 0
        %245 = vmatprep.subr.bf16.mxu0 0
        %246 = vmatpush1.bf16.msra.mxu0 0
        %247 = vmatprep.subr.bf16.mxu0 0
        %248 = vmatpush1.bf16.msra.mxu0 0
        %249 = vmatprep.subr.bf16.mxu0 0
        %250 = vmatpush1.bf16.msra.mxu0 0
        %251 = vmatprep.subr.bf16.mxu0 0
        %252 = vmatpush1.bf16.msra.mxu0 0
        %253 = vmatprep.subr.bf16.mxu0 0
        %254 = vmatpush1.bf16.msra.mxu0 0
        %255 = vmatprep.subr.bf16.mxu0 0
        %256 = vmatpush1.bf16.msra.mxu0 0
        %257 = vmatprep.subr.bf16.mxu0 0
        %258 = vmatpush1.bf16.msra.mxu0 0
        %259 = vmatprep.subr.bf16.mxu0 0
        %260 = vmatpush1.bf16.msra.mxu0 0
        %261 = vmatprep.subr.bf16.mxu0 0
        %262 = vmatpush1.bf16.msra.mxu0 0
        %263 = vmatprep.subr.bf16.mxu0 0
        %264 = vmatpush1.bf16.msra.mxu0 0
        %265 = vmatprep.mubr.bf16.mxu0 0
        %266 = vmatmul.mubr.bf16.gmra.mrb[0].mxu0 %v231
        %v267 = vpop.f32.mrb[0].mxu0
        %v268 = vadd.f32 %v222, %v267
        %v269 = vpop.f32.mrb[0].mxu0
        %v270 = vpop.f32.mrb[0].mxu0
        %v271 = vpop.f32.mrb[0].mxu0
        %272 = vdwg.mxu0
        %v273 = vmax.f32 %v268, 0.0
        %v274 = vld [vmem:[#allocation5 + $0x8] sm:$0xf]
        %v275 = vld [vmem:[#allocation5 + $0xc] sm:$0xf]
        %v276 = vpack.c.bf16 %v273, %v273
        %v277 = vld [vmem:[#allocation7 + $0x1] sm:$0x1]
        %v278 = vlaneseq
        %v279 = vshrl.u32 %v278, 7
        %v280 = vsub.s32 0, %v279
        %v281 = vrot.slane %v277, %v280
        %v284 = vunpack.c.l.b16 %v274
        %v285 = vunpack.c.l.b16 %v275
        %v286 = vpack.c.b16 %v285, %v284
        %v289 = vsel %vm229, %v276, 0
        %291 = vmatprep.subr.bf16.mxu0 0
        %292 = vmatpush1.bf16.msra.mxu0 %v286
        %293 = vmatprep.subr.bf16.mxu0 0
        %294 = vmatpush1.bf16.msra.mxu0 0
        %295 = vmatprep.subr.bf16.mxu0 0
        %296 = vmatpush1.bf16.msra.mxu0 0
        %297 = vmatprep.subr.bf16.mxu0 0
        %298 = vmatpush1.bf16.msra.mxu0 0
        %299 = vmatprep.subr.bf16.mxu0 0
        %300 = vmatpush1.bf16.msra.mxu0 0
        %301 = vmatprep.subr.bf16.mxu0 0
        %302 = vmatpush1.bf16.msra.mxu0 0
        %303 = vmatprep.subr.bf16.mxu0 0
        %304 = vmatpush1.bf16.msra.mxu0 0
        %305 = vmatprep.subr.bf16.mxu0 0
        %306 = vmatpush1.bf16.msra.mxu0 0
        %307 = vmatprep.subr.bf16.mxu0 0
        %308 = vmatpush1.bf16.msra.mxu0 0
        %309 = vmatprep.subr.bf16.mxu0 0
        %310 = vmatpush1.bf16.msra.mxu0 0
        %311 = vmatprep.subr.bf16.mxu0 0
        %312 = vmatpush1.bf16.msra.mxu0 0
        %313 = vmatprep.subr.bf16.mxu0 0
        %314 = vmatpush1.bf16.msra.mxu0 0
        %315 = vmatprep.subr.bf16.mxu0 0
        %316 = vmatpush1.bf16.msra.mxu0 0
        %317 = vmatprep.subr.bf16.mxu0 0
        %318 = vmatpush1.bf16.msra.mxu0 0
        %319 = vmatprep.subr.bf16.mxu0 0
        %320 = vmatpush1.bf16.msra.mxu0 0
        %321 = vmatprep.subr.bf16.mxu0 0
        %322 = vmatpush1.bf16.msra.mxu0 0
        %323 = vmatprep.mubr.bf16.mxu0 0
        %324 = vmatmul.mubr.bf16.gmra.mrb[0].mxu0 %v289
        %v325 = vpop.f32.mrb[0].mxu0
        %v326 = vadd.f32 %v281, %v325
        %v327 = vpop.f32.mrb[0].mxu0
        %v328 = vpop.f32.mrb[0].mxu0
        %v329 = vpop.f32.mrb[0].mxu0
        %330 = vdwg.mxu0
        %v331 = vadd.f32 %v326, %v214
        %v332 = vmax.f32 %v331, 0.0
        %v333 = vld [vmem:[#allocation5 + $0x10] sm:$0xf]
        %v334 = vld [vmem:[#allocation5 + $0x14] sm:$0xf]
        %v335 = vpack.c.bf16 %v332, %v332
        %v336 = vld [vmem:[#allocation7 + $0x2] sm:$0x1]
        %v337 = vlaneseq
        %v338 = vshrl.u32 %v337, 7
        %v339 = vsub.s32 0, %v338
        %v340 = vrot.slane %v336, %v339
        %v343 = vunpack.c.l.b16 %v333
        %v344 = vunpack.c.l.b16 %v334
        %v345 = vpack.c.b16 %v344, %v343
        %v348 = vsel %vm229, %v335, 0
        %350 = vmatprep.subr.bf16.mxu0 0
        %351 = vmatpush1.bf16.msra.mxu0 %v345
        %352 = vmatprep.subr.bf16.mxu0 0
        %353 = vmatpush1.bf16.msra.mxu0 0
        %354 = vmatprep.subr.bf16.mxu0 0
        %355 = vmatpush1.bf16.msra.mxu0 0
        %356 = vmatprep.subr.bf16.mxu0 0
        %357 = vmatpush1.bf16.msra.mxu0 0
        %358 = vmatprep.subr.bf16.mxu0 0
        %359 = vmatpush1.bf16.msra.mxu0 0
        %360 = vmatprep.subr.bf16.mxu0 0
        %361 = vmatpush1.bf16.msra.mxu0 0
        %362 = vmatprep.subr.bf16.mxu0 0
        %363 = vmatpush1.bf16.msra.mxu0 0
        %364 = vmatprep.subr.bf16.mxu0 0
        %365 = vmatpush1.bf16.msra.mxu0 0
        %366 = vmatprep.subr.bf16.mxu0 0
        %367 = vmatpush1.bf16.msra.mxu0 0
        %368 = vmatprep.subr.bf16.mxu0 0
        %369 = vmatpush1.bf16.msra.mxu0 0
        %370 = vmatprep.subr.bf16.mxu0 0
        %371 = vmatpush1.bf16.msra.mxu0 0
        %372 = vmatprep.subr.bf16.mxu0 0
        %373 = vmatpush1.bf16.msra.mxu0 0
        %374 = vmatprep.subr.bf16.mxu0 0
        %375 = vmatpush1.bf16.msra.mxu0 0
        %376 = vmatprep.subr.bf16.mxu0 0
        %377 = vmatpush1.bf16.msra.mxu0 0
        %378 = vmatprep.subr.bf16.mxu0 0
        %379 = vmatpush1.bf16.msra.mxu0 0
        %380 = vmatprep.subr.bf16.mxu0 0
        %381 = vmatpush1.bf16.msra.mxu0 0
        %382 = vmatprep.mubr.bf16.mxu0 0
        %383 = vmatmul.mubr.bf16.gmra.mrb[0].mxu0 %v348
        %v384 = vpop.f32.mrb[0].mxu0
        %v385 = vadd.f32 %v340, %v384
        %v386 = vpop.f32.mrb[0].mxu0
        %v387 = vpop.f32.mrb[0].mxu0
        %v388 = vpop.f32.mrb[0].mxu0
        %389 = vdwg.mxu0
        %v390 = vlaneseq
        %v391 = vand.u32 %v390, 127
        %vm392 = vcmp.lt.s32.totalorder %v391, 32
        %v393 = vmax.f32 %v385, 0.0
        %v394 = vsel %vm392, %v393, %v385
        %v395 = vld [vmem:[#allocation5 + $0x18] sm:$0xf]
        %v396 = vld [vmem:[#allocation5 + $0x1c] sm:$0xf]
        %v397 = vld [vmem:[#allocation5 + $0x20] sm:$0xf]
        %v398 = vld [vmem:[#allocation5 + $0x24] sm:$0xf]
        %v399 = vld [vmem:[#allocation5 + $0x28] sm:$0xf]
        %v400 = vld [vmem:[#allocation5 + $0x2c] sm:$0xf]
        %v401 = vld [vmem:[#allocation5 + $0x30] sm:$0xf]
        %v402 = vld [vmem:[#allocation5 + $0x34] sm:$0xf]
        %v403 = vpack.c.bf16 %v394, %v394
        %v404 = vld [vmem:[#allocation7 + $0x3] sm:$0x1]
        %v405 = vlaneseq
        %v406 = vshrl.u32 %v405, 7
        %v407 = vsub.s32 0, %v406
        %v408 = vrot.slane %v404, %v407
        %v417 = vunpack.c.l.b16 %v395
        %v418 = vunpack.c.l.b16 %v396
        %v419 = vunpack.c.l.b16 %v397
        %v420 = vunpack.c.l.b16 %v398
        %v421 = vunpack.c.l.b16 %v399
        %v422 = vunpack.c.l.b16 %v400
        %v423 = vunpack.c.l.b16 %v401
        %v424 = vunpack.c.l.b16 %v402
        %v425 = vpack.c.b16 %v418, %v417
        %v426 = vpack.c.b16 %v420, %v419
        %v427 = vpack.c.b16 %v422, %v421
        %v428 = vpack.c.b16 %v424, %v423
        %vm433 = vcmask 523264
        %v435 = vsel %vm433, %v403, 0
        %437 = vmatprep.subr.bf16.mxu0 0
        %438 = vmatpush1.bf16.msra.mxu0 %v425
        %439 = vmatprep.subr.bf16.mxu0 0
        %440 = vmatpush1.bf16.msra.mxu0 %v426
        %441 = vmatprep.subr.bf16.mxu0 0
        %442 = vmatpush1.bf16.msra.mxu0 %v427
        %443 = vmatprep.subr.bf16.mxu0 0
        %444 = vmatpush1.bf16.msra.mxu0 %v428
        %445 = vmatprep.subr.bf16.mxu0 0
        %446 = vmatpush1.bf16.msra.mxu0 0
        %447 = vmatprep.subr.bf16.mxu0 0
        %448 = vmatpush1.bf16.msra.mxu0 0
        %449 = vmatprep.subr.bf16.mxu0 0
        %450 = vmatpush1.bf16.msra.mxu0 0
        %451 = vmatprep.subr.bf16.mxu0 0
        %452 = vmatpush1.bf16.msra.mxu0 0
        %453 = vmatprep.subr.bf16.mxu0 0
        %454 = vmatpush1.bf16.msra.mxu0 0
        %455 = vmatprep.subr.bf16.mxu0 0
        %456 = vmatpush1.bf16.msra.mxu0 0
        %457 = vmatprep.subr.bf16.mxu0 0
        %458 = vmatpush1.bf16.msra.mxu0 0
        %459 = vmatprep.subr.bf16.mxu0 0
        %460 = vmatpush1.bf16.msra.mxu0 0
        %461 = vmatprep.subr.bf16.mxu0 0
        %462 = vmatpush1.bf16.msra.mxu0 0
        %463 = vmatprep.subr.bf16.mxu0 0
        %464 = vmatpush1.bf16.msra.mxu0 0
        %465 = vmatprep.subr.bf16.mxu0 0
        %466 = vmatpush1.bf16.msra.mxu0 0
        %467 = vmatprep.subr.bf16.mxu0 0
        %468 = vmatpush1.bf16.msra.mxu0 0
        %469 = vmatprep.mubr.bf16.mxu0 0
        %470 = vmatmul.mubr.bf16.gmra.mrb[0].mxu0 %v435
        %v471 = vpop.f32.mrb[0].mxu0
        %v472 = vadd.f32 %v408, %v471
        %v473 = vpop.f32.mrb[0].mxu0
        %v474 = vpop.f32.mrb[0].mxu0
        %v475 = vpop.f32.mrb[0].mxu0
        %476 = vdwg.mxu0
        %v477 = vmax.f32 %v472, 0.0
        %v478 = vld [vmem:[#allocation5 + $0x38] sm:$0xf]
        %v479 = vld [vmem:[#allocation5 + $0x3c] sm:$0xf]
        %v480 = vld [vmem:[#allocation5 + $0x40] sm:$0xf]
        %v481 = vld [vmem:[#allocation5 + $0x44] sm:$0xf]
        %v482 = vpack.c.bf16 %v477, %v477
        %v483 = vld [vmem:[#allocation7 + $0x4] sm:$0x1]
        %v484 = vlaneseq
        %v485 = vshrl.u32 %v484, 7
        %v486 = vsub.s32 0, %v485
        %v487 = vrot.slane %v483, %v486
        %v492 = vunpack.c.l.b16 %v478
        %v493 = vunpack.c.l.b16 %v479
        %v494 = vunpack.c.l.b16 %v480
        %v495 = vunpack.c.l.b16 %v481
        %v496 = vpack.c.b16 %v493, %v492
        %v497 = vpack.c.b16 %v495, %v494
        %vm500 = vcmask 261120
        %v502 = vsel %vm500, %v482, 0
        %504 = vmatprep.subr.bf16.mxu0 0
        %505 = vmatpush1.bf16.msra.mxu0 %v496
        %506 = vmatprep.subr.bf16.mxu0 0
        %507 = vmatpush1.bf16.msra.mxu0 %v497
        %508 = vmatprep.subr.bf16.mxu0 0
        %509 = vmatpush1.bf16.msra.mxu0 0
        %510 = vmatprep.subr.bf16.mxu0 0
        %511 = vmatpush1.bf16.msra.mxu0 0
        %512 = vmatprep.subr.bf16.mxu0 0
        %513 = vmatpush1.bf16.msra.mxu0 0
        %514 = vmatprep.subr.bf16.mxu0 0
        %515 = vmatpush1.bf16.msra.mxu0 0
        %516 = vmatprep.subr.bf16.mxu0 0
        %517 = vmatpush1.bf16.msra.mxu0 0
        %518 = vmatprep.subr.bf16.mxu0 0
        %519 = vmatpush1.bf16.msra.mxu0 0
        %520 = vmatprep.subr.bf16.mxu0 0
        %521 = vmatpush1.bf16.msra.mxu0 0
        %522 = vmatprep.subr.bf16.mxu0 0
        %523 = vmatpush1.bf16.msra.mxu0 0
        %524 = vmatprep.subr.bf16.mxu0 0
        %525 = vmatpush1.bf16.msra.mxu0 0
        %526 = vmatprep.subr.bf16.mxu0 0
        %527 = vmatpush1.bf16.msra.mxu0 0
        %528 = vmatprep.subr.bf16.mxu0 0
        %529 = vmatpush1.bf16.msra.mxu0 0
        %530 = vmatprep.subr.bf16.mxu0 0
        %531 = vmatpush1.bf16.msra.mxu0 0
        %532 = vmatprep.subr.bf16.mxu0 0
        %533 = vmatpush1.bf16.msra.mxu0 0
        %534 = vmatprep.subr.bf16.mxu0 0
        %535 = vmatpush1.bf16.msra.mxu0 0
        %536 = vmatprep.mubr.bf16.mxu0 0
        %537 = vmatmul.mubr.bf16.gmra.mrb[0].mxu0 %v502
        %v538 = vpop.f32.mrb[0].mxu0
        %v539 = vadd.f32 %v487, %v538
        %v540 = vpop.f32.mrb[0].mxu0
        %v541 = vpop.f32.mrb[0].mxu0
        %v542 = vpop.f32.mrb[0].mxu0
        %543 = vdwg.mxu0
        %vm544 = vcmp.lt.s32.totalorder %v391, 64
        %v545 = vmax.f32 %v539, 0.0
        %v546 = vsel %vm544, %v545, %v539
        %v547 = vld [vmem:[#allocation5 + $0x48] sm:$0xf]
        %v548 = vld [vmem:[#allocation5 + $0x4c] sm:$0xf]
        %v549 = vld [vmem:[#allocation5 + $0x50] sm:$0xf]
        %v550 = vld [vmem:[#allocation5 + $0x54] sm:$0xf]
        %v551 = vld [vmem:[#allocation5 + $0x58] sm:$0xf]
        %v552 = vld [vmem:[#allocation5 + $0x5c] sm:$0xf]
        %v553 = vld [vmem:[#allocation5 + $0x60] sm:$0xf]
        %v554 = vld [vmem:[#allocation5 + $0x64] sm:$0xf]
        %v555 = vld [vmem:[#allocation5 + $0x68] sm:$0xf]
        %v556 = vld [vmem:[#allocation5 + $0x6c] sm:$0xf]
        %v557 = vld [vmem:[#allocation5 + $0x70] sm:$0xf]
        %v558 = vld [vmem:[#allocation5 + $0x74] sm:$0xf]
        %v559 = vld [vmem:[#allocation5 + $0x78] sm:$0xf]
        %v560 = vld [vmem:[#allocation5 + $0x7c] sm:$0xf]
        %v561 = vld [vmem:[#allocation5 + $0x80] sm:$0xf]
        %v562 = vld [vmem:[#allocation5 + $0x84] sm:$0xf]
        %v563 = vpack.c.bf16 %v546, %v546
        %v564 = vld [vmem:[#allocation7 + $0x5] sm:$0x1]
        %v565 = vlaneseq
        %v566 = vshrl.u32 %v565, 7
        %v567 = vsub.s32 0, %v566
        %v568 = vrot.slane %v564, %v567
        %v585 = vunpack.c.l.b16 %v547
        %v586 = vunpack.c.l.b16 %v548
        %v587 = vunpack.c.l.b16 %v549
        %v588 = vunpack.c.l.b16 %v550
        %v589 = vunpack.c.l.b16 %v551
        %v590 = vunpack.c.l.b16 %v552
        %v591 = vunpack.c.l.b16 %v553
        %v592 = vunpack.c.l.b16 %v554
        %v593 = vunpack.c.l.b16 %v555
        %v594 = vunpack.c.l.b16 %v556
        %v595 = vunpack.c.l.b16 %v557
        %v596 = vunpack.c.l.b16 %v558
        %v597 = vunpack.c.l.b16 %v559
        %v598 = vunpack.c.l.b16 %v560
        %v599 = vunpack.c.l.b16 %v561
        %v600 = vunpack.c.l.b16 %v562
        %v601 = vpack.c.b16 %v586, %v585
        %v602 = vpack.c.b16 %v588, %v587
        %v603 = vpack.c.b16 %v590, %v589
        %v604 = vpack.c.b16 %v592, %v591
        %v605 = vpack.c.b16 %v594, %v593
        %v606 = vpack.c.b16 %v596, %v595
        %v607 = vpack.c.b16 %v598, %v597
        %v608 = vpack.c.b16 %v600, %v599
        %617 = vmatprep.subr.bf16.mxu0 0
        %618 = vmatpush1.bf16.msra.mxu0 %v601
        %619 = vmatprep.subr.bf16.mxu0 0
        %620 = vmatpush1.bf16.msra.mxu0 %v602
        %621 = vmatprep.subr.bf16.mxu0 0
        %622 = vmatpush1.bf16.msra.mxu0 %v603
        %623 = vmatprep.subr.bf16.mxu0 0
        %624 = vmatpush1.bf16.msra.mxu0 %v604
        %625 = vmatprep.subr.bf16.mxu0 0
        %626 = vmatpush1.bf16.msra.mxu0 %v605
        %627 = vmatprep.subr.bf16.mxu0 0
        %628 = vmatpush1.bf16.msra.mxu0 %v606
        %629 = vmatprep.subr.bf16.mxu0 0
        %630 = vmatpush1.bf16.msra.mxu0 %v607
        %631 = vmatprep.subr.bf16.mxu0 0
        %632 = vmatpush1.bf16.msra.mxu0 %v608
        %633 = vmatprep.subr.bf16.mxu0 0
        %634 = vmatpush1.bf16.msra.mxu0 0
        %635 = vmatprep.subr.bf16.mxu0 0
        %636 = vmatpush1.bf16.msra.mxu0 0
        %637 = vmatprep.subr.bf16.mxu0 0
        %638 = vmatpush1.bf16.msra.mxu0 0
        %639 = vmatprep.subr.bf16.mxu0 0
        %640 = vmatpush1.bf16.msra.mxu0 0
        %641 = vmatprep.subr.bf16.mxu0 0
        %642 = vmatpush1.bf16.msra.mxu0 0
        %643 = vmatprep.subr.bf16.mxu0 0
        %644 = vmatpush1.bf16.msra.mxu0 0
        %645 = vmatprep.subr.bf16.mxu0 0
        %646 = vmatpush1.bf16.msra.mxu0 0
        %647 = vmatprep.subr.bf16.mxu0 0
        %648 = vmatpush1.bf16.msra.mxu0 0
        %649 = vmatprep.mubr.bf16.mxu0 0
        %650 = vmatmul.mubr.bf16.gmra.mrb[0].mxu0 %v563
        %v651 = vpop.f32.mrb[0].mxu0
        %v652 = vadd.f32 %v568, %v651
        %v653 = vpop.f32.mrb[0].mxu0
        %v654 = vpop.f32.mrb[0].mxu0
        %v655 = vpop.f32.mrb[0].mxu0
        %656 = vdwg.mxu0
        %v657 = vmax.f32 %v652, 0.0
        %v658 = vld [vmem:[#allocation5 + $0x88] sm:$0xf]
        %v659 = vld [vmem:[#allocation5 + $0x8c] sm:$0xf]
        %v660 = vld [vmem:[#allocation5 + $0x90] sm:$0xf]
        %v661 = vld [vmem:[#allocation5 + $0x94] sm:$0xf]
        %v662 = vld [vmem:[#allocation5 + $0x98] sm:$0xf]
        %v663 = vld [vmem:[#allocation5 + $0x9c] sm:$0xf]
        %v664 = vld [vmem:[#allocation5 + $0xa0] sm:$0xf]
        %v665 = vld [vmem:[#allocation5 + $0xa4] sm:$0xf]
        %v666 = vpack.c.bf16 %v657, %v657
        %v667 = vld [vmem:[#allocation7 + $0x6] sm:$0x1]
        %v668 = vlaneseq
        %v669 = vshrl.u32 %v668, 7
        %v670 = vsub.s32 0, %v669
        %v671 = vrot.slane %v667, %v670
        %v680 = vunpack.c.l.b16 %v658
        %v681 = vunpack.c.l.b16 %v659
        %v682 = vunpack.c.l.b16 %v660
        %v683 = vunpack.c.l.b16 %v661
        %v684 = vunpack.c.l.b16 %v662
        %v685 = vunpack.c.l.b16 %v663
        %v686 = vunpack.c.l.b16 %v664
        %v687 = vunpack.c.l.b16 %v665
        %v688 = vpack.c.b16 %v681, %v680
        %v689 = vpack.c.b16 %v683, %v682
        %v690 = vpack.c.b16 %v685, %v684
        %v691 = vpack.c.b16 %v687, %v686
        %v697 = vsel %vm433, %v666, 0
        %699 = vmatprep.subr.bf16.mxu0 0
        %700 = vmatpush1.bf16.msra.mxu0 %v688
        %701 = vmatprep.subr.bf16.mxu0 0
        %702 = vmatpush1.bf16.msra.mxu0 %v689
        %703 = vmatprep.subr.bf16.mxu0 0
        %704 = vmatpush1.bf16.msra.mxu0 %v690
        %705 = vmatprep.subr.bf16.mxu0 0
        %706 = vmatpush1.bf16.msra.mxu0 %v691
        %707 = vmatprep.subr.bf16.mxu0 0
        %708 = vmatpush1.bf16.msra.mxu0 0
        %709 = vmatprep.subr.bf16.mxu0 0
        %710 = vmatpush1.bf16.msra.mxu0 0
        %711 = vmatprep.subr.bf16.mxu0 0
        %712 = vmatpush1.bf16.msra.mxu0 0
        %713 = vmatprep.subr.bf16.mxu0 0
        %714 = vmatpush1.bf16.msra.mxu0 0
        %715 = vmatprep.subr.bf16.mxu0 0
        %716 = vmatpush1.bf16.msra.mxu0 0
        %717 = vmatprep.subr.bf16.mxu0 0
        %718 = vmatpush1.bf16.msra.mxu0 0
        %719 = vmatprep.subr.bf16.mxu0 0
        %720 = vmatpush1.bf16.msra.mxu0 0
        %721 = vmatprep.subr.bf16.mxu0 0
        %722 = vmatpush1.bf16.msra.mxu0 0
        %723 = vmatprep.subr.bf16.mxu0 0
        %724 = vmatpush1.bf16.msra.mxu0 0
        %725 = vmatprep.subr.bf16.mxu0 0
        %726 = vmatpush1.bf16.msra.mxu0 0
        %727 = vmatprep.subr.bf16.mxu0 0
        %728 = vmatpush1.bf16.msra.mxu0 0
        %729 = vmatprep.subr.bf16.mxu0 0
        %730 = vmatpush1.bf16.msra.mxu0 0
        %731 = vmatprep.mubr.bf16.mxu0 0
        %732 = vmatmul.mubr.bf16.gmra.mrb[0].mxu0 %v697
        %v733 = vpop.f32.mrb[0].mxu0
        %v734 = vadd.f32 %v671, %v733
        %v735 = vpop.f32.mrb[0].mxu0
        %v736 = vpop.f32.mrb[0].mxu0
        %v737 = vpop.f32.mrb[0].mxu0
        %738 = vdwg.mxu0
        %739 = vst [vmem:[%s212] sm:$0xff] %v734
        %s740 = sand.u32 %s97, 1
        %s741 = scalar_lea.sflag [#allocation4], %s740
        %s742 = sand.u32 %s97, 1
        %s743 = smul.addr %s742, 8
        %s744 = scalar_lea.vmem [#allocation8], %s743
        // Predicated region
        $region45: #{tpu_custom_call.1} parent=31 // pred_check
          %p745 = pneg %p107
        $region46: #{tpu_custom_call.1} parent=31 // pred_check_branch
          %747 = sbr.rel (%p745) target = $region48
        $region47: #{tpu_custom_call.1} parent=31 // pred_region
          %s749 = ssub.s32 128, 128
          %750 = vsyncadd %s741, %s749
          %s751 = smul.addr %s21, 128
          %s752 = scalar_lea.hbm %s3, %s751
          %s754 = sshll.u32 %s744, 4
          %s755 = int_to_ptr.vmem [resolvable:$true] %s754
          %757 = dma.vmem_to_hbm [thread:$0]  %s755, 128, %s752, %s741
        $region48: #{tpu_custom_call.1} parent=31 // pred_fallthru
          _
      $region32: #{tpu_custom_call.1} parent=5 // pred_fallthru
        _
      %p758 = scmp.le.s32.totalorder 2, %s16
      // Predicated region
      $region49: #{tpu_custom_call.1} parent=5 // pred_check
        %p759 = pneg %p758
      $region50: #{tpu_custom_call.1} parent=5 // pred_check_branch
        %761 = sbr.rel (%p759) target = $region52
      $region51: #{tpu_custom_call.1} parent=5 // pred_region
        %s762 = ssub.s32 %s16, 2
        // Predicated region
        $region53: #{tpu_custom_call.1} parent=51 // pred_check
          %p763 = pneg %p113
        $region54: #{tpu_custom_call.1} parent=51 // pred_check_branch
          %765 = sbr.rel (%p763) target = $region56
        $region55: #{tpu_custom_call.1} parent=51 // pred_region
          %s766 = sand.u32 %s98, 1
          %s767 = scalar_lea.sflag [#allocation4], %s766
          %s768 = sand.u32 %s98, 1
          %s769 = smul.addr %s768, 8
          %s770 = scalar_lea.vmem [#allocation8], %s769
          %771 = dma.done %s767, 128
        $region56: #{tpu_custom_call.1} parent=51 // pred_fallthru
          _
      $region52: #{tpu_custom_call.1} parent=5 // pred_fallthru
        _
    $region6: #{tpu_custom_call.1} parent=1 // loop_footer
      %s20 = sadd.s32 1, %s16
    $region7: #{tpu_custom_call.1} parent=1 // loop_footer_branch
      %15 = sbr.rel target = $region3
    $region8: #{tpu_custom_call.1} parent=1 // loop_exit
      _
    %772 = vsyncpa [#allocation3], 1
    %s773 = scalar_lea.sflag [#allocation3], 1
    %774 = vsyncpa %s773, 1
    %775 = vsyncpa [#allocation6], 1
    %776 = vsyncpa [#allocation4], 1
    %s777 = scalar_lea.sflag [#allocation4], 1
    %778 = vsyncpa %s777, 1

</llo_original>
